<compile_context>
chip_gen: v5e
topology: v5e:2x2
jax: 0.10.0
libtpu: 0.0.40
codegen_flags: <defaults>
</compile_context>

<pallas_src>
import numpy as np
import jax
import jax.numpy as jnp
from jax import lax
from jax.experimental import pallas as pl
from jax.experimental.pallas import tpu as pltpu


def conv_bn_lrelu_reorg_kernel(x_ref, w_ref, shift_ref, o_ref):
    """One fused MXU matmul + folded-BN shift add + LeakyReLU(0.1).

    x_ref:     (1, TH, Kc)   row-window im2col tile (lane-dense, zero-padded to Kc)
    w_ref:     (Kc, N)       Toeplitz weight: conv taps * BN scale, reorg in columns
    shift_ref: (1, N)        folded conv-bias / BN shift row (f32)
    o_ref:     (1, TH, N)    final reorg'ed output tile, N = Wo/2 * 4*C2 (lane-dense)
    """
    z = jnp.dot(x_ref[0], w_ref[...], preferred_element_type=jnp.float32)
    z = z + shift_ref[0, :]
    z = jnp.maximum(z, 0.1 * z)              # LeakyReLU(0.1): 2 VPU ops (mul + max)
    o_ref[0] = z.astype(o_ref.dtype)


def _build_reorg_toeplitz_weight(weight, scale, Wp, Wo, Kc):
    """Folded weight matrix.

    Wt[(pr+ky)*Wp*C1 + (2*w2+pc+kx)*C1 + c1,  w2*4*C2 + (2*pc+pr)*C2 + c2]
        = weight[c2, c1, ky, kx] * scale[c2]

    so `slab_row(ho) @ Wt` yields, for every post-reorg row ho, the space-to-depth
    reorg'ed values with channel group g = 2*pc + pr, matching
    torch.cat([x[..,::2,::2], x[..,1::2,::2], x[..,::2,1::2], x[..,1::2,1::2]], 1).
    (Only cross-checked against the in-file JAX reference, which encodes the same
    phase ordering as the PyTorch module above.)
    Every (row, col) pair is hit at most once, so a plain scatter-set is exact.
    """
    C2, C1, K, _ = weight.shape
    Wo2, WpC1 = Wo // 2, Wp * C1

    # value tensor indexed [ky, kx, c1, c2] with the BN scale folded in
    w_kkio = jnp.transpose(weight, (2, 3, 1, 0)) * scale[None, None, None, :]

    # broadcastable index grids over (pr, pc, w2, ky, kx, c1, c2)
    pr = np.arange(2).reshape(2, 1, 1, 1, 1, 1, 1)
    pc = np.arange(2).reshape(1, 2, 1, 1, 1, 1, 1)
    w2 = np.arange(Wo2).reshape(1, 1, Wo2, 1, 1, 1, 1)
    ky = np.arange(K).reshape(1, 1, 1, K, 1, 1, 1)
    kx = np.arange(K).reshape(1, 1, 1, 1, K, 1, 1)
    c1 = np.arange(C1).reshape(1, 1, 1, 1, 1, C1, 1)
    c2 = np.arange(C2).reshape(1, 1, 1, 1, 1, 1, C2)

    full = (2, 2, Wo2, K, K, C1, C2)
    rows = np.broadcast_to((pr + ky) * WpC1 + (2 * w2 + pc + kx) * C1 + c1, full)
    cols = np.broadcast_to(w2 * (4 * C2) + (2 * pc + pr) * C2 + c2, full)
    vals = jnp.broadcast_to(w_kkio[None, None, None], full)

    wt = jnp.zeros((Kc, Wo2 * 4 * C2), jnp.float32)
    return wt.at[rows, cols].set(vals)


def _build_row_window_slab(x_nchw, padding, K, compute_dtype, Kc):
    """NCHW -> padded, lane-dense row-window im2col slab (B, Ho/2, Kc).

    slab[b, ho, y*Wp*C1 + w*C1 + c1] = xpad[b, 2*ho + y, w, c1]  for y in [0, K].
    One (K+1)-row window per *output* row serves both conv-row parities, so the
    slab is only (K+1)/2 = 2x the input (vs 3x for a per-conv-row im2col).
    """
    B, C1, H, W = x_nchw.shape
    Hp, Wp = H + 2 * padding, W + 2 * padding
    Ho = Hp - K + 1
    xpad = jnp.pad(jnp.transpose(x_nchw, (0, 2, 3, 1)),
                   ((0, 0), (padding, padding), (padding, padding), (0, 0)))
    xpad = xpad.reshape(B, Hp, Wp * C1)
    taps = [xpad[:, y:y + Ho:2, :] for y in range(K + 1)]     # each (B, Ho/2, Wp*C1)
    slab = jnp.concatenate(taps, axis=-1)                      # (B, Ho/2, (K+1)*Wp*C1)
    pad = Kc - slab.shape[-1]
    if pad:
        slab = jnp.pad(slab, ((0, 0), (0, 0), (0, pad)))
    return slab.astype(compute_dtype)


def _vmem_limit_bytes():
    """Generation-aware scoped-VMEM budget: ~3/4 of physical VMEM, capped at
    100 MiB (v5e/v6e: 128 MiB -> 96 MiB; v7x: 64 MiB -> 48 MiB)."""
    try:
        cap = getattr(pltpu.get_tpu_info(), "vmem_capacity_bytes", None)
    except Exception:
        cap = None
    if not cap:
        cap = 64 * 1024 * 1024
    return int(max(32 * 1024 * 1024, min(cap * 3 // 4, 100 * 1024 * 1024)))


def _pick_tile_rows(Ho2, Kc, n_out, in_bytes, out_bytes, vmem_limit):
    """LARGEST 8-aligned row tile dividing Ho2 that fits the VMEM budget
    (big M tiles amortize the MXU weight load and the ~0.35us/step overhead)."""
    assert Ho2 % 8 == 0, (
        f"post-reorg height {Ho2} must be 8-aligned")  # TODO(synk): pad rows otherwise
    budget = int(vmem_limit * 0.8)                     # headroom for Mosaic internals
    best = None
    for th in range(8, Ho2 + 1, 8):
        if Ho2 % th:
            continue
        need = (2 * th * Kc * in_bytes          # x tile, double-buffered
                + 2 * th * n_out * out_bytes    # out tile, double-buffered
                + Kc * n_out * in_bytes         # Toeplitz weight, single-buffered
                + 4 * n_out)                    # shift row
        if need <= budget:
            best = th
    assert best is not None, "no 8-aligned row tile fits VMEM; width-tile the Toeplitz"
    return best


def reorg_layer_forward(x_nchw, weight, bias, gamma, beta, running_mean,
                        running_var, *, padding=1, eps=1e-5,
                        compute_dtype=jnp.float32, out_dtype=jnp.float32):
    """Full ReorgLayer forward.  x_nchw: (B, C1, H, W) f32, weight: (C2, C1, K, K)."""
    B, C1, H, W = x_nchw.shape
    C2, _, K, _ = weight.shape
    Hp, Wp = H + 2 * padding, W + 2 * padding
    Ho, Wo = Hp - K + 1, Wp - K + 1                       # stride 1
    if (Ho % 2) or (Wo % 2):
        raise ValueError("space-to-depth reorg needs even conv-output H and W")
    Ho2, Wo2 = Ho // 2, Wo // 2
    n_out = Wo2 * 4 * C2                                  # lane-dense output width
    Kc = -(-((K + 1) * Wp * C1) // 128) * 128             # contraction, 128-padded

    # Fold eval-mode BN into the conv (scale into weight columns, everything else
    # into one shift row); fold the reorg permutation into the Toeplitz columns.
    scale = gamma / jnp.sqrt(running_var + eps)                          # (C2,)
    shift = (bias - running_mean) * scale + beta                         # (C2,)
    w_toep = _build_reorg_toeplitz_weight(weight, scale, Wp, Wo, Kc).astype(compute_dtype)
    shift_row = jnp.tile(shift, 2 * Wo).reshape(1, n_out).astype(jnp.float32)

    slab = _build_row_window_slab(x_nchw, padding, K, compute_dtype, Kc)

    vmem_limit = _vmem_limit_bytes()
    tile_rows = _pick_tile_rows(Ho2, Kc, n_out,
                                np.dtype(compute_dtype).itemsize,
                                np.dtype(out_dtype).itemsize, vmem_limit)

    def run(single_buffer_consts):
        # Single-buffer the grid-constant weight / shift so the freed VMEM can go
        # into larger row tiles (critical within v7x's 64 MiB per-core VMEM).
        kw = dict(pipeline_mode=pl.Buffered(1)) if single_buffer_consts else {}
        return pl.pallas_call(
            conv_bn_lrelu_reorg_kernel,
            out_shape=jax.ShapeDtypeStruct((B, Ho2, n_out), out_dtype),
            grid_spec=pl.GridSpec(
                grid=(B, Ho2 // tile_rows),
                in_specs=[
                    pl.BlockSpec((1, tile_rows, Kc), lambda b, r: (b, r, 0)),
                    pl.BlockSpec((Kc, n_out), lambda b, r: (0, 0), **kw),
                    pl.BlockSpec((1, n_out), lambda b, r: (0, 0), **kw),
                ],
                out_specs=pl.BlockSpec((1, tile_rows, n_out), lambda b, r: (b, r, 0)),
            ),
            compiler_params=pltpu.CompilerParams(
                # Both axes independent -> megacore shards batch/row tiles (v7x 2 TCs).
                dimension_semantics=("parallel", "parallel"),
                vmem_limit_bytes=vmem_limit,
            ),
        )(slab, w_toep, shift_row)

    try:
        y = run(True)
    except Exception:   # older jax without BlockSpec(pipeline_mode=...): default buffering
        y = run(False)

    # y[b, ho, w2*4*C2 + g*C2 + c2] is already the reorg'ed value (g = 2*pc + pr),
    # i.e. the final tensor in NHWC.  Only a pure layout transpose to NCHW remains.
    # TODO(synk): for NHWC consumers return y.reshape(B, Ho2, Wo2, 4*C2) directly
    # and drop this output-sized XLA pass entirely.
    return jnp.transpose(y.reshape(B, Ho2, Wo2, 4 * C2), (0, 3, 1, 2))


def _reference(x_nchw, weight, bias, gamma, beta, running_mean, running_var,
               *, padding=1, eps=1e-5):
    """Pure-JAX reference matching the PyTorch module (eval-mode BN), all f32."""
    y = lax.conv_general_dilated(
        x_nchw, weight, window_strides=(1, 1),
        padding=((padding, padding), (padding, padding)),
        dimension_numbers=("NCHW", "OIHW", "NCHW"),
    )
    y = y + bias.reshape(1, -1, 1, 1)
    scale = gamma / jnp.sqrt(running_var + eps)
    y = (y - running_mean.reshape(1, -1, 1, 1)) * scale.reshape(1, -1, 1, 1) \
        + beta.reshape(1, -1, 1, 1)
    y = jnp.where(y > 0, y, 0.1 * y)
    return jnp.concatenate(
        [y[..., ::2, ::2], y[..., 1::2, ::2], y[..., ::2, 1::2], y[..., 1::2, 1::2]],
        axis=1,
    )


if __name__ == "__main__":
    # Small shapes: batch=2, c1=4, c2=8, 16x16 spatial, k=3, padding=1.
    B, C1, C2, H, W, K = 2, 4, 8, 16, 16, 3
    key = jax.random.PRNGKey(0)
    k_x, k_w, k_b, k_g, k_bt = jax.random.split(key, 5)

    x = jax.random.normal(k_x, (B, C1, H, W), dtype=jnp.float32)

    # Deterministic synthetic parameters (module __init__ shapes), eval-mode BN stats.
    weight = 0.1 * jax.random.normal(k_w, (C2, C1, K, K), dtype=jnp.float32)
    bias = 0.05 * jax.random.normal(k_b, (C2,), dtype=jnp.float32)
    gamma = 1.0 + 0.1 * jax.random.normal(k_g, (C2,), dtype=jnp.float32)
    beta = 0.1 * jax.random.normal(k_bt, (C2,), dtype=jnp.float32)
    running_mean = jnp.zeros((C2,), dtype=jnp.float32)
    running_var = jnp.ones((C2,), dtype=jnp.float32)

    ref = _reference(x, weight, bias, gamma, beta, running_mean, running_var,
                     padding=1)

    # f32 compute path: tight check against the f32 reference.
    out = jax.block_until_ready(reorg_layer_forward(
        x, weight, bias, gamma, beta, running_mean, running_var,
        padding=1, compute_dtype=jnp.float32))
    assert out.shape == (B, 4 * C2, H // 2, W // 2), out.shape
    assert jnp.allclose(out, ref, rtol=1e-3, atol=1e-3), \
        float(jnp.max(jnp.abs(out - ref)))

    # bf16 compute path (native v6e/v7x MXU dtype, f32 accumulation): looser check.
    out_bf16 = jax.block_until_ready(reorg_layer_forward(
        x, weight, bias, gamma, beta, running_mean, running_var,
        padding=1, compute_dtype=jnp.bfloat16))
    assert jnp.allclose(out_bf16, ref, rtol=5e-2, atol=5e-2), \
        float(jnp.max(jnp.abs(out_bf16 - ref)))

    print("KERNEL_OK")
</pallas_src>

<mosaic_0001>
module attributes {stable_mosaic.version = 11 : i64} {
  func.func @conv_bn_lrelu_reorg_kernel(%arg0: i32, %arg1: i32, %arg2: memref<1x8x384xf32, #tpu.memory_space<vmem>>, %arg3: memref<384x256xf32, #tpu.memory_space<vmem>>, %arg4: memref<1x256xf32, #tpu.memory_space<vmem>>, %arg5: memref<1x8x256xf32, #tpu.memory_space<vmem>>) attributes {dimension_semantics = [#tpu.dimension_semantics<parallel>, #tpu.dimension_semantics<parallel>], iteration_bounds = array<i64: 2, 1>, scalar_prefetch = 0 : i64, scratch_operands = 0 : i64, tpu.core_type = #tpu.core_type<tc>, window_params = [{transform_indices = @transform_0, window_bounds = array<i64: 1, 8, 384>}, {pipeline_mode = #tpu.pipeline_mode<synchronous>, transform_indices = @transform_1, window_bounds = array<i64: 384, 256>}, {pipeline_mode = #tpu.pipeline_mode<synchronous>, transform_indices = @transform_2, window_bounds = array<i64: 1, 256>}, {transform_indices = @transform_3, window_bounds = array<i64: 1, 8, 256>}]} {
    %c0 = arith.constant 0 : index
    %c0_0 = arith.constant 0 : index
    %c0_1 = arith.constant 0 : index
    %0 = vector.load %arg2[%c0, %c0_0, %c0_1] : memref<1x8x384xf32, #tpu.memory_space<vmem>>, vector<1x8x384xf32>
    %1 = vector.shape_cast %0 : vector<1x8x384xf32> to vector<8x384xf32>
    %c0_2 = arith.constant 0 : index
    %c0_3 = arith.constant 0 : index
    %2 = vector.load %arg3[%c0_2, %c0_3] : memref<384x256xf32, #tpu.memory_space<vmem>>, vector<384x256xf32>
    %cst = arith.constant dense<0.000000e+00> : vector<8x256xf32>
    %3 = tpu.matmul %1, %2, %cst {dimension_numbers = #tpu.dot_dimension_numbers<[1], [0], [0], [1], [0, 0, 1, 1], [], []>} : vector<8x384xf32>, vector<384x256xf32>, vector<8x256xf32> -> vector<8x256xf32>
    %c0_4 = arith.constant 0 : index
    %c0_5 = arith.constant 0 : index
    %4 = vector.load %arg4[%c0_4, %c0_5] : memref<1x256xf32, #tpu.memory_space<vmem>>, vector<1x256xf32>
    %5 = vector.shape_cast %4 : vector<1x256xf32> to vector<256xf32>
    %6 = vector.shape_cast %5 : vector<256xf32> to vector<1x256xf32>
    %7 = vector.broadcast %6 : vector<1x256xf32> to vector<8x256xf32>
    %8 = arith.addf %3, %7 : vector<8x256xf32>
    %cst_6 = arith.constant 1.000000e-01 : f32
    %9 = vector.broadcast %cst_6 : f32 to vector<8x256xf32>
    %10 = arith.mulf %9, %8 : vector<8x256xf32>
    %11 = arith.maximumf %8, %10 : vector<8x256xf32>
    %c0_7 = arith.constant 0 : index
    %c0_8 = arith.constant 0 : index
    %c0_9 = arith.constant 0 : index
    %12 = vector.load %arg5[%c0_7, %c0_8, %c0_9] : memref<1x8x256xf32, #tpu.memory_space<vmem>>, vector<1x8x256xf32>
    %13 = vector.shape_cast %12 : vector<1x8x256xf32> to vector<8x256xf32>
    %14 = vector.shape_cast %11 : vector<8x256xf32> to vector<1x8x256xf32>
    tpu.vector_store %arg5[%c0_7, %c0_8, %c0_9], %14 {strides = array<i32>} : memref<1x8x256xf32, #tpu.memory_space<vmem>>, vector<1x8x256xf32>,
    return
  }
  func.func @transform_0(%arg0: i32, %arg1: i32) -> (i32, i32, i32) {
    %c0_i32 = arith.constant 0 : i32
    %c0_i32_0 = arith.constant 0 : i32
    return %arg0, %arg1, %c0_i32 : i32, i32, i32
  }
  func.func @transform_1(%arg0: i32, %arg1: i32) -> (i32, i32) {
    %c0_i32 = arith.constant 0 : i32
    %c0_i32_0 = arith.constant 0 : i32
    %c0_i32_1 = arith.constant 0 : i32
    return %c0_i32, %c0_i32_0 : i32, i32
  }
  func.func @transform_2(%arg0: i32, %arg1: i32) -> (i32, i32) {
    %c0_i32 = arith.constant 0 : i32
    %c0_i32_0 = arith.constant 0 : i32
    %c0_i32_1 = arith.constant 0 : i32
    return %c0_i32, %c0_i32_0 : i32, i32
  }
  func.func @transform_3(%arg0: i32, %arg1: i32) -> (i32, i32, i32) {
    %c0_i32 = arith.constant 0 : i32
    %c0_i32_0 = arith.constant 0 : i32
    return %arg0, %arg1, %c0_i32 : i32, i32, i32
  }
}

module attributes {stable_mosaic.version = 11 : i64} {
  func.func @conv_bn_lrelu_reorg_kernel(%arg0: i32, %arg1: i32, %arg2: memref<1x8x384xf32, #tpu.memory_space<vmem>>, %arg3: memref<384x256xf32, #tpu.memory_space<vmem>>, %arg4: memref<1x256xf32, #tpu.memory_space<vmem>>, %arg5: memref<1x8x256xf32, #tpu.memory_space<vmem>>) attributes {dimension_semantics = [#tpu.dimension_semantics<parallel>, #tpu.dimension_semantics<parallel>], iteration_bounds = array<i64: 2, 1>, scalar_prefetch = 0 : i64, scratch_operands = 0 : i64, tpu.core_type = #tpu.core_type<tc>, window_params = [{transform_indices = @transform_0, window_bounds = array<i64: 1, 8, 384>}, {pipeline_mode = #tpu.pipeline_mode<synchronous>, transform_indices = @transform_1, window_bounds = array<i64: 384, 256>}, {pipeline_mode = #tpu.pipeline_mode<synchronous>, transform_indices = @transform_2, window_bounds = array<i64: 1, 256>}, {transform_indices = @transform_3, window_bounds = array<i64: 1, 8, 256>}]} {
    %c0 = arith.constant 0 : index
    %c0_0 = arith.constant 0 : index
    %c0_1 = arith.constant 0 : index
    %0 = vector.load %arg2[%c0, %c0_0, %c0_1] : memref<1x8x384xf32, #tpu.memory_space<vmem>>, vector<1x8x384xf32>
    %1 = vector.shape_cast %0 : vector<1x8x384xf32> to vector<8x384xf32>
    %c0_2 = arith.constant 0 : index
    %c0_3 = arith.constant 0 : index
    %2 = vector.load %arg3[%c0_2, %c0_3] : memref<384x256xf32, #tpu.memory_space<vmem>>, vector<384x256xf32>
    %cst = arith.constant dense<0.000000e+00> : vector<8x256xf32>
    %3 = tpu.matmul %1, %2, %cst {dimension_numbers = #tpu.dot_dimension_numbers<[1], [0], [0], [1], [0, 0, 1, 1], [], []>} : vector<8x384xf32>, vector<384x256xf32>, vector<8x256xf32> -> vector<8x256xf32>
    %c0_4 = arith.constant 0 : index
    %c0_5 = arith.constant 0 : index
    %4 = vector.load %arg4[%c0_4, %c0_5] : memref<1x256xf32, #tpu.memory_space<vmem>>, vector<1x256xf32>
    %5 = vector.shape_cast %4 : vector<1x256xf32> to vector<256xf32>
    %6 = vector.shape_cast %5 : vector<256xf32> to vector<1x256xf32>
    %7 = vector.broadcast %6 : vector<1x256xf32> to vector<8x256xf32>
    %8 = arith.addf %3, %7 : vector<8x256xf32>
    %cst_6 = arith.constant 1.000000e-01 : f32
    %9 = vector.broadcast %cst_6 : f32 to vector<8x256xf32>
    %10 = arith.mulf %9, %8 : vector<8x256xf32>
    %11 = arith.maximumf %8, %10 : vector<8x256xf32>
    %c0_7 = arith.constant 0 : index
    %c0_8 = arith.constant 0 : index
    %c0_9 = arith.constant 0 : index
    %12 = vector.load %arg5[%c0_7, %c0_8, %c0_9] : memref<1x8x256xf32, #tpu.memory_space<vmem>>, vector<1x8x256xf32>
    %13 = vector.shape_cast %12 : vector<1x8x256xf32> to vector<8x256xf32>
    %14 = vector.shape_cast %11 : vector<8x256xf32> to vector<1x8x256xf32>
    tpu.vector_store %arg5[%c0_7, %c0_8, %c0_9], %14 {strides = array<i32>} : memref<1x8x256xf32, #tpu.memory_space<vmem>>, vector<1x8x256xf32>,
    return
  }
  func.func @transform_0(%arg0: i32, %arg1: i32) -> (i32, i32, i32) {
    %c0_i32 = arith.constant 0 : i32
    %c0_i32_0 = arith.constant 0 : i32
    return %arg0, %arg1, %c0_i32 : i32, i32, i32
  }
  func.func @transform_1(%arg0: i32, %arg1: i32) -> (i32, i32) {
    %c0_i32 = arith.constant 0 : i32
    %c0_i32_0 = arith.constant 0 : i32
    %c0_i32_1 = arith.constant 0 : i32
    return %c0_i32, %c0_i32_0 : i32, i32
  }
  func.func @transform_2(%arg0: i32, %arg1: i32) -> (i32, i32) {
    %c0_i32 = arith.constant 0 : i32
    %c0_i32_0 = arith.constant 0 : i32
    %c0_i32_1 = arith.constant 0 : i32
    return %c0_i32, %c0_i32_0 : i32, i32
  }
  func.func @transform_3(%arg0: i32, %arg1: i32) -> (i32, i32, i32) {
    %c0_i32 = arith.constant 0 : i32
    %c0_i32_0 = arith.constant 0 : i32
    return %arg0, %arg1, %c0_i32 : i32, i32, i32
  }
}

</mosaic_0001>

<llo_original>
// kernel: tpu_custom_call.1
$region0: #{tpu_custom_call.1}
  #allocation0 [shape = 'u32[]', space=smem, size = 0x4, offset = 0x4, fixed_abs, tag = 'smem constant byte address 0x4 - core index']
  #allocation1 [shape = 'u32[72,128]{1,0:T(1,128)}', space=vmem, size = 0x9000, scoped, tag = 'internal scratch']
  %s0 = inlined_call_operand.hbm [shape: f32[2,8,384], index: 0, kind: input, shape index: {}]
  %s1 = inlined_call_operand.hbm [shape: f32[384,256], index: 1, kind: input, shape index: {}]
  %s2 = inlined_call_operand.hbm [shape: f32[1,256], index: 2, kind: input, shape index: {}]
  %s3 = inlined_call_operand.hbm [shape: f32[2,8,256], index: 3, kind: output, shape index: {}]
  %s4 = sld [smem:[#allocation0]]
  $region57: #{tpu_custom_call.1} parent=0
    _
  %s6 = ssub.s32 1, %s4
  %s7 = scalar_select 0, %s6, %s4
  $region1: #{tpu_custom_call.1} parent=0
    #allocation2 [shape = 'u8[24576]{0}', space=vmem, size = 0x6000, scoped, tag = 'input window, operand 0']
    #allocation3 [shape = 's32[2]{0}', space=sflag, size = 0x8, scoped, tag = 'scoped memory for tpu_custom_call.1']
    #allocation4 [shape = 's32[2]{0}', space=sflag, size = 0x8, scoped, tag = 'scoped memory for tpu_custom_call.1']
    #allocation5 [shape = 'u8[393216]{0}', space=vmem, size = 0x60000, scoped, tag = 'input window, operand 1, single buffered']
    #allocation6 [shape = 's32[1]{0}', space=sflag, size = 0x4, scoped, tag = 'scoped memory for tpu_custom_call.1']
    #allocation7 [shape = 'u8[1024]{0}', space=vmem, size = 0x400, scoped, tag = 'input window, operand 2, single buffered']
    #allocation8 [shape = 'u8[16384]{0}', space=vmem, size = 0x4000, scoped, tag = 'output window, operand 0']
    %8 = vsyncpa [#allocation3], 0
    %s9 = scalar_lea.sflag [#allocation3], 1
    %10 = vsyncpa %s9, 0
    %11 = vsyncpa [#allocation6], 0
    %12 = vsyncpa [#allocation4], 0
    %s13 = scalar_lea.sflag [#allocation4], 1
    %14 = vsyncpa %s13, 0
    loop: start=0, step=1, limit=4
    $region2: #{tpu_custom_call.1} parent=1 // loop_pre_header
      _
    $region3: #{tpu_custom_call.1} parent=1 // loop_header
      %s16 = sphi 0, %s20
      %p17 = scmp.ge.s32.totalorder %s16, 4
      %s23 = sphi 0, %s35
      %s24 = sphi 0, %s31
      %s25 = sphi 0, %s23
      %s26 = sphi 0, %s24
      %s27 = sphi 0, %s25
      %s28 = sphi 0, %s26
      %s40 = sphi 0, %s42
      %s43 = sphi 0, %s40
      %s44 = sphi 0, %s43
      %s60 = sphi 0, %s44
      %s64 = sphi 0, %s64
      %s66 = sphi 0, %s64
      %s67 = sphi 0, %s66
      %s81 = sphi 0, %s67
      %s85 = sphi 0, %s85
      %s87 = sphi 0, %s85
      %s88 = sphi 0, %s87
      %s102 = sphi 0, %s88
      %s110 = sphi 0, %s112
      %s113 = sphi 0, %s110
      %s114 = sphi 0, %s113
      %s130 = sphi 0, %s114
    $region4: #{tpu_custom_call.1} parent=1 // loop_header_branch
      %19 = sbr.rel (%p17) target = $region8
    $region5: #{tpu_custom_call.1} parent=1 // loop_body
      %s21 = ssub.s32 %s16, 1
      %s22 = ssub.s32 %s16, 2
      %s29 = sadd.s32 1, %s24
      %p30 = scmp.ge.s32.totalorder %s29, 1
      %s31 = scalar_select %p30, 0, %s29
      %s32 = sadd.s32 1, %s23
      %s33 = scalar_select %p30, %s32, %s23
      %p34 = scmp.ge.s32.totalorder %s33, 2
      %s35 = scalar_select %p34, 0, %s33
      %s36 = ssub.s32 %s23, %s35
      %s37 = ssub.s32 %s24, %s31
      %s38 = sor.u32 %s36, %s37
      %p39 = scmp.eq.s32.totalorder %s38, 0
      %s41 = sadd.s32 %s40, 1
      %s42 = scalar_select %p39, %s40, %s41
      %p45 = pneg %p39
      %p46 = scmp.eq.s32.totalorder %s16, 1
      %p47 = por %p45, %p46
      %p48 = scmp.ne.s32.totalorder %s40, %s43
      %p49 = scmp.eq.s32.totalorder %s16, 0
      %p50 = por %p48, %p49
      %p51 = scmp.ne.s32.totalorder %s40, %s43
      %p52 = scmp.eq.s32.totalorder %s21, 1
      %p53 = por %p51, %p52
      %p54 = scmp.ne.s32.totalorder %s43, %s44
      %p55 = scmp.eq.s32.totalorder %s21, 0
      %p56 = por %p54, %p55
      %p57 = scmp.ne.s32.totalorder %s43, %s44
      %p58 = scmp.eq.s32.totalorder %s22, 1
      %p59 = por %p57, %p58
      %p61 = scmp.ne.s32.totalorder %s44, %s60
      %p62 = scmp.eq.s32.totalorder %s22, 0
      %p63 = por %p61, %p62
      %s65 = sadd.s32 %s64, 1
      %p68 = scmp.eq.s32.totalorder %s16, 1
      %p69 = scmp.ne.s32.totalorder %s64, %s66
      %p70 = scmp.eq.s32.totalorder %s16, 0
      %p71 = por %p69, %p70
      %p72 = scmp.ne.s32.totalorder %s64, %s66
      %p73 = scmp.eq.s32.totalorder %s21, 1
      %p74 = por %p72, %p73
      %p75 = scmp.ne.s32.totalorder %s66, %s67
      %p76 = scmp.eq.s32.totalorder %s21, 0
      %p77 = por %p75, %p76
      %p78 = scmp.ne.s32.totalorder %s66, %s67
      %p79 = scmp.eq.s32.totalorder %s22, 1
      %p80 = por %p78, %p79
      %p82 = scmp.ne.s32.totalorder %s67, %s81
      %p83 = scmp.eq.s32.totalorder %s22, 0
      %p84 = por %p82, %p83
      %s86 = sadd.s32 %s85, 1
      %p89 = scmp.eq.s32.totalorder %s16, 1
      %p90 = scmp.ne.s32.totalorder %s85, %s87
      %p91 = scmp.eq.s32.totalorder %s16, 0
      %p92 = por %p90, %p91
      %p93 = scmp.ne.s32.totalorder %s85, %s87
      %p94 = scmp.eq.s32.totalorder %s21, 1
      %p95 = por %p93, %p94
      %p96 = scmp.ne.s32.totalorder %s87, %s88
      %p97 = scmp.eq.s32.totalorder %s21, 0
      %p98 = por %p96, %p97
      %p99 = scmp.ne.s32.totalorder %s87, %s88
      %p100 = scmp.eq.s32.totalorder %s22, 1
      %p101 = por %p99, %p100
      %p103 = scmp.ne.s32.totalorder %s88, %s102
      %p104 = scmp.eq.s32.totalorder %s22, 0
      %p105 = por %p103, %p104
      %s106 = ssub.s32 %s23, %s35
      %s107 = ssub.s32 %s24, %s31
      %s108 = sor.u32 %s106, %s107
      %p109 = scmp.eq.s32.totalorder %s108, 0
      %s111 = sadd.s32 %s110, 1
      %s112 = scalar_select %p109, %s110, %s111
      %p115 = pneg %p109
      %p116 = scmp.eq.s32.totalorder %s16, 1
      %p117 = por %p115, %p116
      %p118 = scmp.ne.s32.totalorder %s110, %s113
      %p119 = scmp.eq.s32.totalorder %s16, 0
      %p120 = por %p118, %p119
      %p121 = scmp.ne.s32.totalorder %s110, %s113
      %p122 = scmp.eq.s32.totalorder %s21, 1
      %p123 = por %p121, %p122
      %p124 = scmp.ne.s32.totalorder %s113, %s114
      %p125 = scmp.eq.s32.totalorder %s21, 0
      %p126 = por %p124, %p125
      %p127 = scmp.ne.s32.totalorder %s113, %s114
      %p128 = scmp.eq.s32.totalorder %s22, 1
      %p129 = por %p127, %p128
      %p131 = scmp.ne.s32.totalorder %s114, %s130
      %p132 = scmp.eq.s32.totalorder %s22, 0
      %p133 = por %p131, %p132
      %p134 = scmp.le.s32.totalorder 1, %s16
      %p135 = scmp.lt.s32.totalorder %s16, 3
      %p136 = pnand %p134, %p135
      %p137 = pneg %p136
      // Predicated region
      $region9: #{tpu_custom_call.1} parent=5 // pred_check
        _
      $region10: #{tpu_custom_call.1} parent=5 // pred_check_branch
        %139 = sbr.rel (%p136) target = $region12
      $region11: #{tpu_custom_call.1} parent=5 // pred_region
        %s140 = ssub.s32 %s16, 1
        // Predicated region
        $region13: #{tpu_custom_call.1} parent=11 // pred_check
          %p141 = pneg %p77
        $region14: #{tpu_custom_call.1} parent=11 // pred_check_branch
          %143 = sbr.rel (%p141) target = $region16
        $region15: #{tpu_custom_call.1} parent=11 // pred_region
          %145 = vsyncadd [#allocation6], 0
          %s146 = sshll.u32 %s1, 4
          %s147 = int_to_ptr.hbm [resolvable:$true] %s146
          %s148 = sshll.u32 [#allocation5], 4
          %s149 = int_to_ptr.vmem [resolvable:$true] %s148
          %154 = dma.hbm_to_vmem [thread:$0]  %s147, 12288, %s149, [#allocation6], 256, 256, 16
        $region16: #{tpu_custom_call.1} parent=11 // pred_fallthru
          _
        // Predicated region
        $region17: #{tpu_custom_call.1} parent=11 // pred_check
          %p155 = pneg %p98
        $region18: #{tpu_custom_call.1} parent=11 // pred_check_branch
          %157 = sbr.rel (%p155) target = $region20
        $region19: #{tpu_custom_call.1} parent=11 // pred_region
          %159 = vsyncadd [#allocation6], 0
          %s161 = sshll.u32 %s2, 4
          %s162 = int_to_ptr.hbm [resolvable:$true] %s161
          %s163 = sshll.u32 [#allocation7], 4
          %s164 = int_to_ptr.vmem [resolvable:$true] %s163
          %166 = dma.hbm_to_vmem [thread:$0]  %s162, 32, %s164, [#allocation6]
        $region20: #{tpu_custom_call.1} parent=11 // pred_fallthru
          _
      $region12: #{tpu_custom_call.1} parent=5 // pred_fallthru
        _
      %p167 = scmp.lt.s32.totalorder %s16, 2
      // Predicated region
      $region21: #{tpu_custom_call.1} parent=5 // pred_check
        %p168 = pneg %p167
      $region22: #{tpu_custom_call.1} parent=5 // pred_check_branch
        %170 = sbr.rel (%p168) target = $region24
      $region23: #{tpu_custom_call.1} parent=5 // pred_region
        // Predicated region
        $region25: #{tpu_custom_call.1} parent=23 // pred_check
          %p171 = pneg %p50
        $region26: #{tpu_custom_call.1} parent=23 // pred_check_branch
          %173 = sbr.rel (%p171) target = $region28
        $region27: #{tpu_custom_call.1} parent=23 // pred_region
          %s174 = sand.u32 %s40, 1
          %s175 = scalar_lea.sflag [#allocation3], %s174
          %s176 = sand.u32 %s40, 1
          %s177 = smul.addr %s176, 24
          %s178 = scalar_lea.vmem [#allocation2], %s177
          %180 = vsyncadd %s175, 0
          %s181 = smul.addr %s24, 3
          %s182 = smul.addr %s23, 3
          %s183 = sadd.s32 %s181, %s182
          %s184 = smul.addr %s183, 8
          %s185 = scalar_lea.hbm %s0, %s184
          %s187 = sshll.u32 %s185, 4
          %s188 = int_to_ptr.hbm [resolvable:$true] %s187
          %s189 = sshll.u32 %s178, 4
          %s190 = int_to_ptr.vmem [resolvable:$true] %s189
          %192 = dma.hbm_to_vmem [thread:$0]  %s188, 384, %s190, %s175
        $region28: #{tpu_custom_call.1} parent=23 // pred_fallthru
          _
      $region24: #{tpu_custom_call.1} parent=5 // pred_fallthru
        _
      %p193 = scmp.le.s32.totalorder 1, %s16
      %p194 = scmp.lt.s32.totalorder %s16, 3
      %p195 = pnand %p193, %p194
      %p196 = pneg %p195
      // Predicated region
      $region29: #{tpu_custom_call.1} parent=5 // pred_check
        _
      $region30: #{tpu_custom_call.1} parent=5 // pred_check_branch
        %198 = sbr.rel (%p195) target = $region32
      $region31: #{tpu_custom_call.1} parent=5 // pred_region
        %s199 = ssub.s32 %s16, 1
        %s200 = sand.u32 %s43, 1
        %s201 = scalar_lea.sflag [#allocation3], %s200
        %s202 = sand.u32 %s43, 1
        %s203 = smul.addr %s202, 24
        %s204 = scalar_lea.vmem [#allocation2], %s203
        // Predicated region
        $region33: #{tpu_custom_call.1} parent=31 // pred_check
          %p205 = pneg %p56
        $region34: #{tpu_custom_call.1} parent=31 // pred_check_branch
          %207 = sbr.rel (%p205) target = $region36
        $region35: #{tpu_custom_call.1} parent=31 // pred_region
          %209 = dma.done %s201, 384
        $region36: #{tpu_custom_call.1} parent=31 // pred_fallthru
          _
        // Predicated region
        $region37: #{tpu_custom_call.1} parent=31 // pred_check
          %p210 = pneg %p77
        $region38: #{tpu_custom_call.1} parent=31 // pred_check_branch
          %212 = sbr.rel (%p210) target = $region40
        $region39: #{tpu_custom_call.1} parent=31 // pred_region
          %214 = dma.done [#allocation6], 12288
        $region40: #{tpu_custom_call.1} parent=31 // pred_fallthru
          _
        // Predicated region
        $region41: #{tpu_custom_call.1} parent=31 // pred_check
          %p215 = pneg %p98
        $region42: #{tpu_custom_call.1} parent=31 // pred_check_branch
          %217 = sbr.rel (%p215) target = $region44
        $region43: #{tpu_custom_call.1} parent=31 // pred_region
          %219 = dma.done [#allocation6], 32
        $region44: #{tpu_custom_call.1} parent=31 // pred_fallthru
          _
        %s220 = sand.u32 %s43, 1
        %s221 = scalar_lea.sflag [#allocation3], %s220
        %s222 = sand.u32 %s43, 1
        %s223 = smul.addr %s222, 24
        %s224 = scalar_lea.vmem [#allocation2], %s223
        %p225 = pneg %p56
        %p226 = pneg %p53
        %p227 = pneg %p77
        %p228 = pneg %p74
        %p229 = pneg %p98
        %p230 = pneg %p95
        %p231 = pneg %p126
        %p232 = pneg %p123
        %s233 = sand.u32 %s113, 1
        %s234 = scalar_lea.sflag [#allocation4], %s233
        %s235 = sand.u32 %s113, 1
        %s236 = smul.addr %s235, 16
        %s237 = scalar_lea.vmem [#allocation8], %s236
        %v238 = vld [vmem:[%s204] sm:$0xff]
        %v239 = vld [vmem:[%s204 + $0x8] sm:$0xff]
        %v240 = vld [vmem:[%s204 + $0x10] sm:$0xff]
        %v241 = vld [vmem:[#allocation5] sm:$0xff]
        %v242 = vld [vmem:[#allocation5 + $0x8] sm:$0xff]
        %v243 = vld [vmem:[#allocation5 + $0x10] sm:$0xff]
        %v244 = vld [vmem:[#allocation5 + $0x18] sm:$0xff]
        %v245 = vld [vmem:[#allocation5 + $0x20] sm:$0xff]
        %v246 = vld [vmem:[#allocation5 + $0x28] sm:$0xff]
        %v247 = vld [vmem:[#allocation5 + $0x30] sm:$0xff]
        %v248 = vld [vmem:[#allocation5 + $0x38] sm:$0xff]
        %v249 = vld [vmem:[#allocation5 + $0x40] sm:$0xff]
        %v250 = vld [vmem:[#allocation5 + $0x48] sm:$0xff]
        %v251 = vld [vmem:[#allocation5 + $0x50] sm:$0xff]
        %v252 = vld [vmem:[#allocation5 + $0x58] sm:$0xff]
        %v253 = vld [vmem:[#allocation5 + $0x60] sm:$0xff]
        %v254 = vld [vmem:[#allocation5 + $0x68] sm:$0xff]
        %v255 = vld [vmem:[#allocation5 + $0x70] sm:$0xff]
        %v256 = vld [vmem:[#allocation5 + $0x78] sm:$0xff]
        %v257 = vld [vmem:[#allocation5 + $0x80] sm:$0xff]
        %v258 = vld [vmem:[#allocation5 + $0x88] sm:$0xff]
        %v259 = vld [vmem:[#allocation5 + $0x90] sm:$0xff]
        %v260 = vld [vmem:[#allocation5 + $0x98] sm:$0xff]
        %v261 = vld [vmem:[#allocation5 + $0xa0] sm:$0xff]
        %v262 = vld [vmem:[#allocation5 + $0xa8] sm:$0xff]
        %v263 = vld [vmem:[#allocation5 + $0xb0] sm:$0xff]
        %v264 = vld [vmem:[#allocation5 + $0xb8] sm:$0xff]
        %v265 = vld [vmem:[#allocation5 + $0xc0] sm:$0xff]
        %v266 = vld [vmem:[#allocation5 + $0xc8] sm:$0xff]
        %v267 = vld [vmem:[#allocation5 + $0xd0] sm:$0xff]
        %v268 = vld [vmem:[#allocation5 + $0xd8] sm:$0xff]
        %v269 = vld [vmem:[#allocation5 + $0xe0] sm:$0xff]
        %v270 = vld [vmem:[#allocation5 + $0xe8] sm:$0xff]
        %v271 = vld [vmem:[#allocation5 + $0xf0] sm:$0xff]
        %v272 = vld [vmem:[#allocation5 + $0xf8] sm:$0xff]
        %v273 = vld [vmem:[#allocation5 + $0x100] sm:$0xff]
        %v274 = vld [vmem:[#allocation5 + $0x108] sm:$0xff]
        %v275 = vld [vmem:[#allocation5 + $0x110] sm:$0xff]
        %v276 = vld [vmem:[#allocation5 + $0x118] sm:$0xff]
        %v277 = vld [vmem:[#allocation5 + $0x120] sm:$0xff]
        %v278 = vld [vmem:[#allocation5 + $0x128] sm:$0xff]
        %v279 = vld [vmem:[#allocation5 + $0x130] sm:$0xff]
        %v280 = vld [vmem:[#allocation5 + $0x138] sm:$0xff]
        %v281 = vld [vmem:[#allocation5 + $0x140] sm:$0xff]
        %v282 = vld [vmem:[#allocation5 + $0x148] sm:$0xff]
        %v283 = vld [vmem:[#allocation5 + $0x150] sm:$0xff]
        %v284 = vld [vmem:[#allocation5 + $0x158] sm:$0xff]
        %v285 = vld [vmem:[#allocation5 + $0x160] sm:$0xff]
        %v286 = vld [vmem:[#allocation5 + $0x168] sm:$0xff]
        %v287 = vld [vmem:[#allocation5 + $0x170] sm:$0xff]
        %v288 = vld [vmem:[#allocation5 + $0x178] sm:$0xff]
        %v289 = vld [vmem:[#allocation5 + $0x180] sm:$0xff]
        %v290 = vld [vmem:[#allocation5 + $0x188] sm:$0xff]
        %v291 = vld [vmem:[#allocation5 + $0x190] sm:$0xff]
        %v292 = vld [vmem:[#allocation5 + $0x198] sm:$0xff]
        %v293 = vld [vmem:[#allocation5 + $0x1a0] sm:$0xff]
        %v294 = vld [vmem:[#allocation5 + $0x1a8] sm:$0xff]
        %v295 = vld [vmem:[#allocation5 + $0x1b0] sm:$0xff]
        %v296 = vld [vmem:[#allocation5 + $0x1b8] sm:$0xff]
        %v297 = vld [vmem:[#allocation5 + $0x1c0] sm:$0xff]
        %v298 = vld [vmem:[#allocation5 + $0x1c8] sm:$0xff]
        %v299 = vld [vmem:[#allocation5 + $0x1d0] sm:$0xff]
        %v300 = vld [vmem:[#allocation5 + $0x1d8] sm:$0xff]
        %v301 = vld [vmem:[#allocation5 + $0x1e0] sm:$0xff]
        %v302 = vld [vmem:[#allocation5 + $0x1e8] sm:$0xff]
        %v303 = vld [vmem:[#allocation5 + $0x1f0] sm:$0xff]
        %v304 = vld [vmem:[#allocation5 + $0x1f8] sm:$0xff]
        %v305 = vld [vmem:[#allocation5 + $0x200] sm:$0xff]
        %v306 = vld [vmem:[#allocation5 + $0x208] sm:$0xff]
        %v307 = vld [vmem:[#allocation5 + $0x210] sm:$0xff]
        %v308 = vld [vmem:[#allocation5 + $0x218] sm:$0xff]
        %v309 = vld [vmem:[#allocation5 + $0x220] sm:$0xff]
        %v310 = vld [vmem:[#allocation5 + $0x228] sm:$0xff]
        %v311 = vld [vmem:[#allocation5 + $0x230] sm:$0xff]
        %v312 = vld [vmem:[#allocation5 + $0x238] sm:$0xff]
        %v313 = vld [vmem:[#allocation5 + $0x240] sm:$0xff]
        %v314 = vld [vmem:[#allocation5 + $0x248] sm:$0xff]
        %v315 = vld [vmem:[#allocation5 + $0x250] sm:$0xff]
        %v316 = vld [vmem:[#allocation5 + $0x258] sm:$0xff]
        %v317 = vld [vmem:[#allocation5 + $0x260] sm:$0xff]
        %v318 = vld [vmem:[#allocation5 + $0x268] sm:$0xff]
        %v319 = vld [vmem:[#allocation5 + $0x270] sm:$0xff]
        %v320 = vld [vmem:[#allocation5 + $0x278] sm:$0xff]
        %v321 = vld [vmem:[#allocation5 + $0x280] sm:$0xff]
        %v322 = vld [vmem:[#allocation5 + $0x288] sm:$0xff]
        %v323 = vld [vmem:[#allocation5 + $0x290] sm:$0xff]
        %v324 = vld [vmem:[#allocation5 + $0x298] sm:$0xff]
        %v325 = vld [vmem:[#allocation5 + $0x2a0] sm:$0xff]
        %v326 = vld [vmem:[#allocation5 + $0x2a8] sm:$0xff]
        %v327 = vld [vmem:[#allocation5 + $0x2b0] sm:$0xff]
        %v328 = vld [vmem:[#allocation5 + $0x2b8] sm:$0xff]
        %v329 = vld [vmem:[#allocation5 + $0x2c0] sm:$0xff]
        %v330 = vld [vmem:[#allocation5 + $0x2c8] sm:$0xff]
        %v331 = vld [vmem:[#allocation5 + $0x2d0] sm:$0xff]
        %v332 = vld [vmem:[#allocation5 + $0x2d8] sm:$0xff]
        %v333 = vld [vmem:[#allocation5 + $0x2e0] sm:$0xff]
        %v334 = vld [vmem:[#allocation5 + $0x2e8] sm:$0xff]
        %v335 = vld [vmem:[#allocation5 + $0x2f0] sm:$0xff]
        %v336 = vld [vmem:[#allocation5 + $0x2f8] sm:$0xff]
        %v337 = vld [vmem:[#allocation7] sm:$0x3]
        %v339 = vperm.slane %v337, 0
        %v340 = vperm.slane %v337, 1
        %343 = vmatpush.msra.mxu0 %v271
        %344 = vmatpush.msra.mxu0 %v269
        %345 = vmatpush.msra.mxu0 %v267
        %346 = vmatpush.msra.mxu0 %v265
        %347 = vmatpush.msra.mxu0 %v263
        %348 = vmatpush.msra.mxu0 %v261
        %349 = vmatpush.msra.mxu0 %v259
        %350 = vmatpush.msra.mxu0 %v257
        %351 = vmatpush.msra.mxu0 %v255
        %352 = vmatpush.msra.mxu0 %v253
        %353 = vmatpush.msra.mxu0 %v251
        %354 = vmatpush.msra.mxu0 %v249
        %355 = vmatpush.msra.mxu0 %v247
        %356 = vmatpush.msra.mxu0 %v245
        %357 = vmatpush.msra.mxu0 %v243
        %358 = vmatpush.msra.mxu0 %v241
        %359 = vmatmul.f32.gmra.mxu0 %v238
        %v360 = vpop.f32.mrf.mxu0
        %v361 = vadd.f32 %v339, %v360
        %362 = vdwg.mxu0
        %363 = vmatpush.msra.mxu0 %v303
        %364 = vmatpush.msra.mxu0 %v301
        %365 = vmatpush.msra.mxu0 %v299
        %366 = vmatpush.msra.mxu0 %v297
        %367 = vmatpush.msra.mxu0 %v295
        %368 = vmatpush.msra.mxu0 %v293
        %369 = vmatpush.msra.mxu0 %v291
        %370 = vmatpush.msra.mxu0 %v289
        %371 = vmatpush.msra.mxu0 %v287
        %372 = vmatpush.msra.mxu0 %v285
        %373 = vmatpush.msra.mxu0 %v283
        %374 = vmatpush.msra.mxu0 %v281
        %375 = vmatpush.msra.mxu0 %v279
        %376 = vmatpush.msra.mxu0 %v277
        %377 = vmatpush.msra.mxu0 %v275
        %378 = vmatpush.msra.mxu0 %v273
        %379 = vmatmul.f32.gmra.mxu0 %v239
        %v380 = vpop.f32.mrf.mxu0
        %v381 = vadd.f32 %v361, %v380
        %382 = vdwg.mxu0
        %383 = vmatpush.msra.mxu0 %v335
        %384 = vmatpush.msra.mxu0 %v333
        %385 = vmatpush.msra.mxu0 %v331
        %386 = vmatpush.msra.mxu0 %v329
        %387 = vmatpush.msra.mxu0 %v327
        %388 = vmatpush.msra.mxu0 %v325
        %389 = vmatpush.msra.mxu0 %v323
        %390 = vmatpush.msra.mxu0 %v321
        %391 = vmatpush.msra.mxu0 %v319
        %392 = vmatpush.msra.mxu0 %v317
        %393 = vmatpush.msra.mxu0 %v315
        %394 = vmatpush.msra.mxu0 %v313
        %395 = vmatpush.msra.mxu0 %v311
        %396 = vmatpush.msra.mxu0 %v309
        %397 = vmatpush.msra.mxu0 %v307
        %398 = vmatpush.msra.mxu0 %v305
        %399 = vmatmul.f32.gmra.mxu0 %v240
        %v400 = vpop.f32.mrf.mxu0
        %v401 = vadd.f32 %v381, %v400
        %402 = vdwg.mxu0
        %403 = vmatpush.msra.mxu0 %v272
        %404 = vmatpush.msra.mxu0 %v270
        %405 = vmatpush.msra.mxu0 %v268
        %406 = vmatpush.msra.mxu0 %v266
        %407 = vmatpush.msra.mxu0 %v264
        %408 = vmatpush.msra.mxu0 %v262
        %409 = vmatpush.msra.mxu0 %v260
        %410 = vmatpush.msra.mxu0 %v258
        %411 = vmatpush.msra.mxu0 %v256
        %412 = vmatpush.msra.mxu0 %v254
        %413 = vmatpush.msra.mxu0 %v252
        %414 = vmatpush.msra.mxu0 %v250
        %415 = vmatpush.msra.mxu0 %v248
        %416 = vmatpush.msra.mxu0 %v246
        %417 = vmatpush.msra.mxu0 %v244
        %418 = vmatpush.msra.mxu0 %v242
        %419 = vmatmul.f32.gmra.mxu0 %v238
        %v420 = vpop.f32.mrf.mxu0
        %v421 = vadd.f32 %v340, %v420
        %422 = vdwg.mxu0
        %423 = vmatpush.msra.mxu0 %v304
        %424 = vmatpush.msra.mxu0 %v302
        %425 = vmatpush.msra.mxu0 %v300
        %426 = vmatpush.msra.mxu0 %v298
        %427 = vmatpush.msra.mxu0 %v296
        %428 = vmatpush.msra.mxu0 %v294
        %429 = vmatpush.msra.mxu0 %v292
        %430 = vmatpush.msra.mxu0 %v290
        %431 = vmatpush.msra.mxu0 %v288
        %432 = vmatpush.msra.mxu0 %v286
        %433 = vmatpush.msra.mxu0 %v284
        %434 = vmatpush.msra.mxu0 %v282
        %435 = vmatpush.msra.mxu0 %v280
        %436 = vmatpush.msra.mxu0 %v278
        %437 = vmatpush.msra.mxu0 %v276
        %438 = vmatpush.msra.mxu0 %v274
        %439 = vmatmul.f32.gmra.mxu0 %v239
        %v440 = vpop.f32.mrf.mxu0
        %v441 = vadd.f32 %v421, %v440
        %442 = vdwg.mxu0
        %443 = vmatpush.msra.mxu0 %v336
        %444 = vmatpush.msra.mxu0 %v334
        %445 = vmatpush.msra.mxu0 %v332
        %446 = vmatpush.msra.mxu0 %v330
        %447 = vmatpush.msra.mxu0 %v328
        %448 = vmatpush.msra.mxu0 %v326
        %449 = vmatpush.msra.mxu0 %v324
        %450 = vmatpush.msra.mxu0 %v322
        %451 = vmatpush.msra.mxu0 %v320
        %452 = vmatpush.msra.mxu0 %v318
        %453 = vmatpush.msra.mxu0 %v316
        %454 = vmatpush.msra.mxu0 %v314
        %455 = vmatpush.msra.mxu0 %v312
        %456 = vmatpush.msra.mxu0 %v310
        %457 = vmatpush.msra.mxu0 %v308
        %458 = vmatpush.msra.mxu0 %v306
        %459 = vmatmul.f32.gmra.mxu0 %v240
        %v460 = vpop.f32.mrf.mxu0
        %v461 = vadd.f32 %v441, %v460
        %462 = vdwg.mxu0
        %v463 = vmul.f32 %v401, 0.1
        %v464 = vmul.f32 %v461, 0.1
        %v465 = vmax.f32 %v401, %v463
        %v466 = vmax.f32 %v461, %v464
        %467 = vst [vmem:[%s237] sm:$0xff] %v465
        %468 = vst [vmem:[%s237 + $0x8] sm:$0xff] %v466
        %s469 = sand.u32 %s113, 1
        %s470 = scalar_lea.sflag [#allocation4], %s469
        %s471 = sand.u32 %s113, 1
        %s472 = smul.addr %s471, 16
        %s473 = scalar_lea.vmem [#allocation8], %s472
        // Predicated region
        $region45: #{tpu_custom_call.1} parent=31 // pred_check
          %p474 = pneg %p123
        $region46: #{tpu_custom_call.1} parent=31 // pred_check_branch
          %476 = sbr.rel (%p474) target = $region48
        $region47: #{tpu_custom_call.1} parent=31 // pred_region
          %478 = vsyncadd %s470, 0
          %s479 = smul.addr %s26, 2
          %s480 = smul.addr %s25, 2
          %s481 = sadd.s32 %s479, %s480
          %s482 = smul.addr %s481, 8
          %s483 = scalar_lea.hbm %s3, %s482
          %s485 = sshll.u32 %s473, 4
          %s486 = int_to_ptr.vmem [resolvable:$true] %s485
          %s487 = sshll.u32 %s483, 4
          %s488 = int_to_ptr.hbm [resolvable:$true] %s487
          %490 = dma.vmem_to_hbm [thread:$0]  %s486, 256, %s488, %s470
        $region48: #{tpu_custom_call.1} parent=31 // pred_fallthru
          _
      $region32: #{tpu_custom_call.1} parent=5 // pred_fallthru
        _
      %p491 = scmp.le.s32.totalorder 2, %s16
      // Predicated region
      $region49: #{tpu_custom_call.1} parent=5 // pred_check
        %p492 = pneg %p491
      $region50: #{tpu_custom_call.1} parent=5 // pred_check_branch
        %494 = sbr.rel (%p492) target = $region52
      $region51: #{tpu_custom_call.1} parent=5 // pred_region
        %s495 = ssub.s32 %s16, 2
        // Predicated region
        $region53: #{tpu_custom_call.1} parent=51 // pred_check
          %p496 = pneg %p129
        $region54: #{tpu_custom_call.1} parent=51 // pred_check_branch
          %498 = sbr.rel (%p496) target = $region56
        $region55: #{tpu_custom_call.1} parent=51 // pred_region
          %s499 = sand.u32 %s114, 1
          %s500 = scalar_lea.sflag [#allocation4], %s499
          %s501 = sand.u32 %s114, 1
          %s502 = smul.addr %s501, 16
          %s503 = scalar_lea.vmem [#allocation8], %s502
          %505 = dma.done %s500, 256
        $region56: #{tpu_custom_call.1} parent=51 // pred_fallthru
          _
      $region52: #{tpu_custom_call.1} parent=5 // pred_fallthru
        _
    $region6: #{tpu_custom_call.1} parent=1 // loop_footer
      %s20 = sadd.s32 1, %s16
    $region7: #{tpu_custom_call.1} parent=1 // loop_footer_branch
      %15 = sbr.rel target = $region3
    $region8: #{tpu_custom_call.1} parent=1 // loop_exit
      _
    %506 = vsyncpa [#allocation3], 1
    %s507 = scalar_lea.sflag [#allocation3], 1
    %508 = vsyncpa %s507, 1
    %509 = vsyncpa [#allocation6], 1
    %510 = vsyncpa [#allocation4], 1
    %s511 = scalar_lea.sflag [#allocation4], 1
    %512 = vsyncpa %s511, 1

// kernel: tpu_custom_call.1
$region0: #{tpu_custom_call.1}
  #allocation0 [shape = 'u32[]', space=smem, size = 0x4, offset = 0x4, fixed_abs, tag = 'smem constant byte address 0x4 - core index']
  #allocation1 [shape = 'u32[72,128]{1,0:T(1,128)}', space=vmem, size = 0x9000, scoped, tag = 'internal scratch']
  %s0 = inlined_call_operand.hbm [shape: f32[2,8,384], index: 0, kind: input, shape index: {}]
  %s1 = inlined_call_operand.hbm [shape: f32[384,256], index: 1, kind: input, shape index: {}]
  %s2 = inlined_call_operand.hbm [shape: f32[1,256], index: 2, kind: input, shape index: {}]
  %s3 = inlined_call_operand.hbm [shape: f32[2,8,256], index: 3, kind: output, shape index: {}]
  %s4 = sld [smem:[#allocation0]]
  $region57: #{tpu_custom_call.1} parent=0
    _
  %s6 = ssub.s32 1, %s4
  %s7 = scalar_select 0, %s6, %s4
  $region1: #{tpu_custom_call.1} parent=0
    #allocation2 [shape = 'u8[24576]{0}', space=vmem, size = 0x6000, scoped, tag = 'input window, operand 0']
    #allocation3 [shape = 's32[2]{0}', space=sflag, size = 0x8, scoped, tag = 'scoped memory for tpu_custom_call.1']
    #allocation4 [shape = 's32[2]{0}', space=sflag, size = 0x8, scoped, tag = 'scoped memory for tpu_custom_call.1']
    #allocation5 [shape = 'u8[393216]{0}', space=vmem, size = 0x60000, scoped, tag = 'input window, operand 1, single buffered']
    #allocation6 [shape = 's32[1]{0}', space=sflag, size = 0x4, scoped, tag = 'scoped memory for tpu_custom_call.1']
    #allocation7 [shape = 'u8[1024]{0}', space=vmem, size = 0x400, scoped, tag = 'input window, operand 2, single buffered']
    #allocation8 [shape = 'u8[16384]{0}', space=vmem, size = 0x4000, scoped, tag = 'output window, operand 0']
    %8 = vsyncpa [#allocation3], 0
    %s9 = scalar_lea.sflag [#allocation3], 1
    %10 = vsyncpa %s9, 0
    %11 = vsyncpa [#allocation6], 0
    %12 = vsyncpa [#allocation4], 0
    %s13 = scalar_lea.sflag [#allocation4], 1
    %14 = vsyncpa %s13, 0
    loop: start=0, step=1, limit=4
    $region2: #{tpu_custom_call.1} parent=1 // loop_pre_header
      _
    $region3: #{tpu_custom_call.1} parent=1 // loop_header
      %s16 = sphi 0, %s20
      %p17 = scmp.ge.s32.totalorder %s16, 4
      %s23 = sphi 0, %s35
      %s24 = sphi 0, %s31
      %s25 = sphi 0, %s23
      %s26 = sphi 0, %s24
      %s27 = sphi 0, %s25
      %s28 = sphi 0, %s26
      %s40 = sphi 0, %s42
      %s43 = sphi 0, %s40
      %s44 = sphi 0, %s43
      %s60 = sphi 0, %s44
      %s64 = sphi 0, %s64
      %s66 = sphi 0, %s64
      %s67 = sphi 0, %s66
      %s81 = sphi 0, %s67
      %s85 = sphi 0, %s85
      %s87 = sphi 0, %s85
      %s88 = sphi 0, %s87
      %s102 = sphi 0, %s88
      %s110 = sphi 0, %s112
      %s113 = sphi 0, %s110
      %s114 = sphi 0, %s113
      %s130 = sphi 0, %s114
    $region4: #{tpu_custom_call.1} parent=1 // loop_header_branch
      %19 = sbr.rel (%p17) target = $region8
    $region5: #{tpu_custom_call.1} parent=1 // loop_body
      %s21 = ssub.s32 %s16, 1
      %s22 = ssub.s32 %s16, 2
      %s29 = sadd.s32 1, %s24
      %p30 = scmp.ge.s32.totalorder %s29, 1
      %s31 = scalar_select %p30, 0, %s29
      %s32 = sadd.s32 1, %s23
      %s33 = scalar_select %p30, %s32, %s23
      %p34 = scmp.ge.s32.totalorder %s33, 2
      %s35 = scalar_select %p34, 0, %s33
      %s36 = ssub.s32 %s23, %s35
      %s37 = ssub.s32 %s24, %s31
      %s38 = sor.u32 %s36, %s37
      %p39 = scmp.eq.s32.totalorder %s38, 0
      %s41 = sadd.s32 %s40, 1
      %s42 = scalar_select %p39, %s40, %s41
      %p45 = pneg %p39
      %p46 = scmp.eq.s32.totalorder %s16, 1
      %p47 = por %p45, %p46
      %p48 = scmp.ne.s32.totalorder %s40, %s43
      %p49 = scmp.eq.s32.totalorder %s16, 0
      %p50 = por %p48, %p49
      %p51 = scmp.ne.s32.totalorder %s40, %s43
      %p52 = scmp.eq.s32.totalorder %s21, 1
      %p53 = por %p51, %p52
      %p54 = scmp.ne.s32.totalorder %s43, %s44
      %p55 = scmp.eq.s32.totalorder %s21, 0
      %p56 = por %p54, %p55
      %p57 = scmp.ne.s32.totalorder %s43, %s44
      %p58 = scmp.eq.s32.totalorder %s22, 1
      %p59 = por %p57, %p58
      %p61 = scmp.ne.s32.totalorder %s44, %s60
      %p62 = scmp.eq.s32.totalorder %s22, 0
      %p63 = por %p61, %p62
      %s65 = sadd.s32 %s64, 1
      %p68 = scmp.eq.s32.totalorder %s16, 1
      %p69 = scmp.ne.s32.totalorder %s64, %s66
      %p70 = scmp.eq.s32.totalorder %s16, 0
      %p71 = por %p69, %p70
      %p72 = scmp.ne.s32.totalorder %s64, %s66
      %p73 = scmp.eq.s32.totalorder %s21, 1
      %p74 = por %p72, %p73
      %p75 = scmp.ne.s32.totalorder %s66, %s67
      %p76 = scmp.eq.s32.totalorder %s21, 0
      %p77 = por %p75, %p76
      %p78 = scmp.ne.s32.totalorder %s66, %s67
      %p79 = scmp.eq.s32.totalorder %s22, 1
      %p80 = por %p78, %p79
      %p82 = scmp.ne.s32.totalorder %s67, %s81
      %p83 = scmp.eq.s32.totalorder %s22, 0
      %p84 = por %p82, %p83
      %s86 = sadd.s32 %s85, 1
      %p89 = scmp.eq.s32.totalorder %s16, 1
      %p90 = scmp.ne.s32.totalorder %s85, %s87
      %p91 = scmp.eq.s32.totalorder %s16, 0
      %p92 = por %p90, %p91
      %p93 = scmp.ne.s32.totalorder %s85, %s87
      %p94 = scmp.eq.s32.totalorder %s21, 1
      %p95 = por %p93, %p94
      %p96 = scmp.ne.s32.totalorder %s87, %s88
      %p97 = scmp.eq.s32.totalorder %s21, 0
      %p98 = por %p96, %p97
      %p99 = scmp.ne.s32.totalorder %s87, %s88
      %p100 = scmp.eq.s32.totalorder %s22, 1
      %p101 = por %p99, %p100
      %p103 = scmp.ne.s32.totalorder %s88, %s102
      %p104 = scmp.eq.s32.totalorder %s22, 0
      %p105 = por %p103, %p104
      %s106 = ssub.s32 %s23, %s35
      %s107 = ssub.s32 %s24, %s31
      %s108 = sor.u32 %s106, %s107
      %p109 = scmp.eq.s32.totalorder %s108, 0
      %s111 = sadd.s32 %s110, 1
      %s112 = scalar_select %p109, %s110, %s111
      %p115 = pneg %p109
      %p116 = scmp.eq.s32.totalorder %s16, 1
      %p117 = por %p115, %p116
      %p118 = scmp.ne.s32.totalorder %s110, %s113
      %p119 = scmp.eq.s32.totalorder %s16, 0
      %p120 = por %p118, %p119
      %p121 = scmp.ne.s32.totalorder %s110, %s113
      %p122 = scmp.eq.s32.totalorder %s21, 1
      %p123 = por %p121, %p122
      %p124 = scmp.ne.s32.totalorder %s113, %s114
      %p125 = scmp.eq.s32.totalorder %s21, 0
      %p126 = por %p124, %p125
      %p127 = scmp.ne.s32.totalorder %s113, %s114
      %p128 = scmp.eq.s32.totalorder %s22, 1
      %p129 = por %p127, %p128
      %p131 = scmp.ne.s32.totalorder %s114, %s130
      %p132 = scmp.eq.s32.totalorder %s22, 0
      %p133 = por %p131, %p132
      %p134 = scmp.le.s32.totalorder 1, %s16
      %p135 = scmp.lt.s32.totalorder %s16, 3
      %p136 = pnand %p134, %p135
      %p137 = pneg %p136
      // Predicated region
      $region9: #{tpu_custom_call.1} parent=5 // pred_check
        _
      $region10: #{tpu_custom_call.1} parent=5 // pred_check_branch
        %139 = sbr.rel (%p136) target = $region12
      $region11: #{tpu_custom_call.1} parent=5 // pred_region
        %s140 = ssub.s32 %s16, 1
        // Predicated region
        $region13: #{tpu_custom_call.1} parent=11 // pred_check
          %p141 = pneg %p77
        $region14: #{tpu_custom_call.1} parent=11 // pred_check_branch
          %143 = sbr.rel (%p141) target = $region16
        $region15: #{tpu_custom_call.1} parent=11 // pred_region
          %145 = vsyncadd [#allocation6], 0
          %s146 = sshll.u32 %s1, 4
          %s147 = int_to_ptr.hbm [resolvable:$true] %s146
          %s148 = sshll.u32 [#allocation5], 4
          %s149 = int_to_ptr.vmem [resolvable:$true] %s148
          %154 = dma.hbm_to_vmem [thread:$0]  %s147, 12288, %s149, [#allocation6], 256, 256, 16
        $region16: #{tpu_custom_call.1} parent=11 // pred_fallthru
          _
        // Predicated region
        $region17: #{tpu_custom_call.1} parent=11 // pred_check
          %p155 = pneg %p98
        $region18: #{tpu_custom_call.1} parent=11 // pred_check_branch
          %157 = sbr.rel (%p155) target = $region20
        $region19: #{tpu_custom_call.1} parent=11 // pred_region
          %159 = vsyncadd [#allocation6], 0
          %s161 = sshll.u32 %s2, 4
          %s162 = int_to_ptr.hbm [resolvable:$true] %s161
          %s163 = sshll.u32 [#allocation7], 4
          %s164 = int_to_ptr.vmem [resolvable:$true] %s163
          %166 = dma.hbm_to_vmem [thread:$0]  %s162, 32, %s164, [#allocation6]
        $region20: #{tpu_custom_call.1} parent=11 // pred_fallthru
          _
      $region12: #{tpu_custom_call.1} parent=5 // pred_fallthru
        _
      %p167 = scmp.lt.s32.totalorder %s16, 2
      // Predicated region
      $region21: #{tpu_custom_call.1} parent=5 // pred_check
        %p168 = pneg %p167
      $region22: #{tpu_custom_call.1} parent=5 // pred_check_branch
        %170 = sbr.rel (%p168) target = $region24
      $region23: #{tpu_custom_call.1} parent=5 // pred_region
        // Predicated region
        $region25: #{tpu_custom_call.1} parent=23 // pred_check
          %p171 = pneg %p50
        $region26: #{tpu_custom_call.1} parent=23 // pred_check_branch
          %173 = sbr.rel (%p171) target = $region28
        $region27: #{tpu_custom_call.1} parent=23 // pred_region
          %s174 = sand.u32 %s40, 1
          %s175 = scalar_lea.sflag [#allocation3], %s174
          %s176 = sand.u32 %s40, 1
          %s177 = smul.addr %s176, 24
          %s178 = scalar_lea.vmem [#allocation2], %s177
          %180 = vsyncadd %s175, 0
          %s181 = smul.addr %s24, 3
          %s182 = smul.addr %s23, 3
          %s183 = sadd.s32 %s181, %s182
          %s184 = smul.addr %s183, 8
          %s185 = scalar_lea.hbm %s0, %s184
          %s187 = sshll.u32 %s185, 4
          %s188 = int_to_ptr.hbm [resolvable:$true] %s187
          %s189 = sshll.u32 %s178, 4
          %s190 = int_to_ptr.vmem [resolvable:$true] %s189
          %192 = dma.hbm_to_vmem [thread:$0]  %s188, 384, %s190, %s175
        $region28: #{tpu_custom_call.1} parent=23 // pred_fallthru
          _
      $region24: #{tpu_custom_call.1} parent=5 // pred_fallthru
        _
      %p193 = scmp.le.s32.totalorder 1, %s16
      %p194 = scmp.lt.s32.totalorder %s16, 3
      %p195 = pnand %p193, %p194
      %p196 = pneg %p195
      // Predicated region
      $region29: #{tpu_custom_call.1} parent=5 // pred_check
        _
      $region30: #{tpu_custom_call.1} parent=5 // pred_check_branch
        %198 = sbr.rel (%p195) target = $region32
      $region31: #{tpu_custom_call.1} parent=5 // pred_region
        %s199 = ssub.s32 %s16, 1
        %s200 = sand.u32 %s43, 1
        %s201 = scalar_lea.sflag [#allocation3], %s200
        %s202 = sand.u32 %s43, 1
        %s203 = smul.addr %s202, 24
        %s204 = scalar_lea.vmem [#allocation2], %s203
        // Predicated region
        $region33: #{tpu_custom_call.1} parent=31 // pred_check
          %p205 = pneg %p56
        $region34: #{tpu_custom_call.1} parent=31 // pred_check_branch
          %207 = sbr.rel (%p205) target = $region36
        $region35: #{tpu_custom_call.1} parent=31 // pred_region
          %209 = dma.done %s201, 384
        $region36: #{tpu_custom_call.1} parent=31 // pred_fallthru
          _
        // Predicated region
        $region37: #{tpu_custom_call.1} parent=31 // pred_check
          %p210 = pneg %p77
        $region38: #{tpu_custom_call.1} parent=31 // pred_check_branch
          %212 = sbr.rel (%p210) target = $region40
        $region39: #{tpu_custom_call.1} parent=31 // pred_region
          %214 = dma.done [#allocation6], 12288
        $region40: #{tpu_custom_call.1} parent=31 // pred_fallthru
          _
        // Predicated region
        $region41: #{tpu_custom_call.1} parent=31 // pred_check
          %p215 = pneg %p98
        $region42: #{tpu_custom_call.1} parent=31 // pred_check_branch
          %217 = sbr.rel (%p215) target = $region44
        $region43: #{tpu_custom_call.1} parent=31 // pred_region
          %219 = dma.done [#allocation6], 32
        $region44: #{tpu_custom_call.1} parent=31 // pred_fallthru
          _
        %s220 = sand.u32 %s43, 1
        %s221 = scalar_lea.sflag [#allocation3], %s220
        %s222 = sand.u32 %s43, 1
        %s223 = smul.addr %s222, 24
        %s224 = scalar_lea.vmem [#allocation2], %s223
        %p225 = pneg %p56
        %p226 = pneg %p53
        %p227 = pneg %p77
        %p228 = pneg %p74
        %p229 = pneg %p98
        %p230 = pneg %p95
        %p231 = pneg %p126
        %p232 = pneg %p123
        %s233 = sand.u32 %s113, 1
        %s234 = scalar_lea.sflag [#allocation4], %s233
        %s235 = sand.u32 %s113, 1
        %s236 = smul.addr %s235, 16
        %s237 = scalar_lea.vmem [#allocation8], %s236
        %v238 = vld [vmem:[%s204] sm:$0xff]
        %v239 = vld [vmem:[%s204 + $0x8] sm:$0xff]
        %v240 = vld [vmem:[%s204 + $0x10] sm:$0xff]
        %v241 = vld [vmem:[#allocation5] sm:$0xff]
        %v242 = vld [vmem:[#allocation5 + $0x8] sm:$0xff]
        %v243 = vld [vmem:[#allocation5 + $0x10] sm:$0xff]
        %v244 = vld [vmem:[#allocation5 + $0x18] sm:$0xff]
        %v245 = vld [vmem:[#allocation5 + $0x20] sm:$0xff]
        %v246 = vld [vmem:[#allocation5 + $0x28] sm:$0xff]
        %v247 = vld [vmem:[#allocation5 + $0x30] sm:$0xff]
        %v248 = vld [vmem:[#allocation5 + $0x38] sm:$0xff]
        %v249 = vld [vmem:[#allocation5 + $0x40] sm:$0xff]
        %v250 = vld [vmem:[#allocation5 + $0x48] sm:$0xff]
        %v251 = vld [vmem:[#allocation5 + $0x50] sm:$0xff]
        %v252 = vld [vmem:[#allocation5 + $0x58] sm:$0xff]
        %v253 = vld [vmem:[#allocation5 + $0x60] sm:$0xff]
        %v254 = vld [vmem:[#allocation5 + $0x68] sm:$0xff]
        %v255 = vld [vmem:[#allocation5 + $0x70] sm:$0xff]
        %v256 = vld [vmem:[#allocation5 + $0x78] sm:$0xff]
        %v257 = vld [vmem:[#allocation5 + $0x80] sm:$0xff]
        %v258 = vld [vmem:[#allocation5 + $0x88] sm:$0xff]
        %v259 = vld [vmem:[#allocation5 + $0x90] sm:$0xff]
        %v260 = vld [vmem:[#allocation5 + $0x98] sm:$0xff]
        %v261 = vld [vmem:[#allocation5 + $0xa0] sm:$0xff]
        %v262 = vld [vmem:[#allocation5 + $0xa8] sm:$0xff]
        %v263 = vld [vmem:[#allocation5 + $0xb0] sm:$0xff]
        %v264 = vld [vmem:[#allocation5 + $0xb8] sm:$0xff]
        %v265 = vld [vmem:[#allocation5 + $0xc0] sm:$0xff]
        %v266 = vld [vmem:[#allocation5 + $0xc8] sm:$0xff]
        %v267 = vld [vmem:[#allocation5 + $0xd0] sm:$0xff]
        %v268 = vld [vmem:[#allocation5 + $0xd8] sm:$0xff]
        %v269 = vld [vmem:[#allocation5 + $0xe0] sm:$0xff]
        %v270 = vld [vmem:[#allocation5 + $0xe8] sm:$0xff]
        %v271 = vld [vmem:[#allocation5 + $0xf0] sm:$0xff]
        %v272 = vld [vmem:[#allocation5 + $0xf8] sm:$0xff]
        %v273 = vld [vmem:[#allocation5 + $0x100] sm:$0xff]
        %v274 = vld [vmem:[#allocation5 + $0x108] sm:$0xff]
        %v275 = vld [vmem:[#allocation5 + $0x110] sm:$0xff]
        %v276 = vld [vmem:[#allocation5 + $0x118] sm:$0xff]
        %v277 = vld [vmem:[#allocation5 + $0x120] sm:$0xff]
        %v278 = vld [vmem:[#allocation5 + $0x128] sm:$0xff]
        %v279 = vld [vmem:[#allocation5 + $0x130] sm:$0xff]
        %v280 = vld [vmem:[#allocation5 + $0x138] sm:$0xff]
        %v281 = vld [vmem:[#allocation5 + $0x140] sm:$0xff]
        %v282 = vld [vmem:[#allocation5 + $0x148] sm:$0xff]
        %v283 = vld [vmem:[#allocation5 + $0x150] sm:$0xff]
        %v284 = vld [vmem:[#allocation5 + $0x158] sm:$0xff]
        %v285 = vld [vmem:[#allocation5 + $0x160] sm:$0xff]
        %v286 = vld [vmem:[#allocation5 + $0x168] sm:$0xff]
        %v287 = vld [vmem:[#allocation5 + $0x170] sm:$0xff]
        %v288 = vld [vmem:[#allocation5 + $0x178] sm:$0xff]
        %v289 = vld [vmem:[#allocation5 + $0x180] sm:$0xff]
        %v290 = vld [vmem:[#allocation5 + $0x188] sm:$0xff]
        %v291 = vld [vmem:[#allocation5 + $0x190] sm:$0xff]
        %v292 = vld [vmem:[#allocation5 + $0x198] sm:$0xff]
        %v293 = vld [vmem:[#allocation5 + $0x1a0] sm:$0xff]
        %v294 = vld [vmem:[#allocation5 + $0x1a8] sm:$0xff]
        %v295 = vld [vmem:[#allocation5 + $0x1b0] sm:$0xff]
        %v296 = vld [vmem:[#allocation5 + $0x1b8] sm:$0xff]
        %v297 = vld [vmem:[#allocation5 + $0x1c0] sm:$0xff]
        %v298 = vld [vmem:[#allocation5 + $0x1c8] sm:$0xff]
        %v299 = vld [vmem:[#allocation5 + $0x1d0] sm:$0xff]
        %v300 = vld [vmem:[#allocation5 + $0x1d8] sm:$0xff]
        %v301 = vld [vmem:[#allocation5 + $0x1e0] sm:$0xff]
        %v302 = vld [vmem:[#allocation5 + $0x1e8] sm:$0xff]
        %v303 = vld [vmem:[#allocation5 + $0x1f0] sm:$0xff]
        %v304 = vld [vmem:[#allocation5 + $0x1f8] sm:$0xff]
        %v305 = vld [vmem:[#allocation5 + $0x200] sm:$0xff]
        %v306 = vld [vmem:[#allocation5 + $0x208] sm:$0xff]
        %v307 = vld [vmem:[#allocation5 + $0x210] sm:$0xff]
        %v308 = vld [vmem:[#allocation5 + $0x218] sm:$0xff]
        %v309 = vld [vmem:[#allocation5 + $0x220] sm:$0xff]
        %v310 = vld [vmem:[#allocation5 + $0x228] sm:$0xff]
        %v311 = vld [vmem:[#allocation5 + $0x230] sm:$0xff]
        %v312 = vld [vmem:[#allocation5 + $0x238] sm:$0xff]
        %v313 = vld [vmem:[#allocation5 + $0x240] sm:$0xff]
        %v314 = vld [vmem:[#allocation5 + $0x248] sm:$0xff]
        %v315 = vld [vmem:[#allocation5 + $0x250] sm:$0xff]
        %v316 = vld [vmem:[#allocation5 + $0x258] sm:$0xff]
        %v317 = vld [vmem:[#allocation5 + $0x260] sm:$0xff]
        %v318 = vld [vmem:[#allocation5 + $0x268] sm:$0xff]
        %v319 = vld [vmem:[#allocation5 + $0x270] sm:$0xff]
        %v320 = vld [vmem:[#allocation5 + $0x278] sm:$0xff]
        %v321 = vld [vmem:[#allocation5 + $0x280] sm:$0xff]
        %v322 = vld [vmem:[#allocation5 + $0x288] sm:$0xff]
        %v323 = vld [vmem:[#allocation5 + $0x290] sm:$0xff]
        %v324 = vld [vmem:[#allocation5 + $0x298] sm:$0xff]
        %v325 = vld [vmem:[#allocation5 + $0x2a0] sm:$0xff]
        %v326 = vld [vmem:[#allocation5 + $0x2a8] sm:$0xff]
        %v327 = vld [vmem:[#allocation5 + $0x2b0] sm:$0xff]
        %v328 = vld [vmem:[#allocation5 + $0x2b8] sm:$0xff]
        %v329 = vld [vmem:[#allocation5 + $0x2c0] sm:$0xff]
        %v330 = vld [vmem:[#allocation5 + $0x2c8] sm:$0xff]
        %v331 = vld [vmem:[#allocation5 + $0x2d0] sm:$0xff]
        %v332 = vld [vmem:[#allocation5 + $0x2d8] sm:$0xff]
        %v333 = vld [vmem:[#allocation5 + $0x2e0] sm:$0xff]
        %v334 = vld [vmem:[#allocation5 + $0x2e8] sm:$0xff]
        %v335 = vld [vmem:[#allocation5 + $0x2f0] sm:$0xff]
        %v336 = vld [vmem:[#allocation5 + $0x2f8] sm:$0xff]
        %v337 = vld [vmem:[#allocation7] sm:$0x3]
        %v339 = vperm.slane %v337, 0
        %v340 = vperm.slane %v337, 1
        %343 = vmatpush.msra.mxu0 %v271
        %344 = vmatpush.msra.mxu0 %v269
        %345 = vmatpush.msra.mxu0 %v267
        %346 = vmatpush.msra.mxu0 %v265
        %347 = vmatpush.msra.mxu0 %v263
        %348 = vmatpush.msra.mxu0 %v261
        %349 = vmatpush.msra.mxu0 %v259
        %350 = vmatpush.msra.mxu0 %v257
        %351 = vmatpush.msra.mxu0 %v255
        %352 = vmatpush.msra.mxu0 %v253
        %353 = vmatpush.msra.mxu0 %v251
        %354 = vmatpush.msra.mxu0 %v249
        %355 = vmatpush.msra.mxu0 %v247
        %356 = vmatpush.msra.mxu0 %v245
        %357 = vmatpush.msra.mxu0 %v243
        %358 = vmatpush.msra.mxu0 %v241
        %359 = vmatmul.f32.gmra.mxu0 %v238
        %v360 = vpop.f32.mrf.mxu0
        %v361 = vadd.f32 %v339, %v360
        %362 = vdwg.mxu0
        %363 = vmatpush.msra.mxu0 %v303
        %364 = vmatpush.msra.mxu0 %v301
        %365 = vmatpush.msra.mxu0 %v299
        %366 = vmatpush.msra.mxu0 %v297
        %367 = vmatpush.msra.mxu0 %v295
        %368 = vmatpush.msra.mxu0 %v293
        %369 = vmatpush.msra.mxu0 %v291
        %370 = vmatpush.msra.mxu0 %v289
        %371 = vmatpush.msra.mxu0 %v287
        %372 = vmatpush.msra.mxu0 %v285
        %373 = vmatpush.msra.mxu0 %v283
        %374 = vmatpush.msra.mxu0 %v281
        %375 = vmatpush.msra.mxu0 %v279
        %376 = vmatpush.msra.mxu0 %v277
        %377 = vmatpush.msra.mxu0 %v275
        %378 = vmatpush.msra.mxu0 %v273
        %379 = vmatmul.f32.gmra.mxu0 %v239
        %v380 = vpop.f32.mrf.mxu0
        %v381 = vadd.f32 %v361, %v380
        %382 = vdwg.mxu0
        %383 = vmatpush.msra.mxu0 %v335
        %384 = vmatpush.msra.mxu0 %v333
        %385 = vmatpush.msra.mxu0 %v331
        %386 = vmatpush.msra.mxu0 %v329
        %387 = vmatpush.msra.mxu0 %v327
        %388 = vmatpush.msra.mxu0 %v325
        %389 = vmatpush.msra.mxu0 %v323
        %390 = vmatpush.msra.mxu0 %v321
        %391 = vmatpush.msra.mxu0 %v319
        %392 = vmatpush.msra.mxu0 %v317
        %393 = vmatpush.msra.mxu0 %v315
        %394 = vmatpush.msra.mxu0 %v313
        %395 = vmatpush.msra.mxu0 %v311
        %396 = vmatpush.msra.mxu0 %v309
        %397 = vmatpush.msra.mxu0 %v307
        %398 = vmatpush.msra.mxu0 %v305
        %399 = vmatmul.f32.gmra.mxu0 %v240
        %v400 = vpop.f32.mrf.mxu0
        %v401 = vadd.f32 %v381, %v400
        %402 = vdwg.mxu0
        %403 = vmatpush.msra.mxu0 %v272
        %404 = vmatpush.msra.mxu0 %v270
        %405 = vmatpush.msra.mxu0 %v268
        %406 = vmatpush.msra.mxu0 %v266
        %407 = vmatpush.msra.mxu0 %v264
        %408 = vmatpush.msra.mxu0 %v262
        %409 = vmatpush.msra.mxu0 %v260
        %410 = vmatpush.msra.mxu0 %v258
        %411 = vmatpush.msra.mxu0 %v256
        %412 = vmatpush.msra.mxu0 %v254
        %413 = vmatpush.msra.mxu0 %v252
        %414 = vmatpush.msra.mxu0 %v250
        %415 = vmatpush.msra.mxu0 %v248
        %416 = vmatpush.msra.mxu0 %v246
        %417 = vmatpush.msra.mxu0 %v244
        %418 = vmatpush.msra.mxu0 %v242
        %419 = vmatmul.f32.gmra.mxu0 %v238
        %v420 = vpop.f32.mrf.mxu0
        %v421 = vadd.f32 %v340, %v420
        %422 = vdwg.mxu0
        %423 = vmatpush.msra.mxu0 %v304
        %424 = vmatpush.msra.mxu0 %v302
        %425 = vmatpush.msra.mxu0 %v300
        %426 = vmatpush.msra.mxu0 %v298
        %427 = vmatpush.msra.mxu0 %v296
        %428 = vmatpush.msra.mxu0 %v294
        %429 = vmatpush.msra.mxu0 %v292
        %430 = vmatpush.msra.mxu0 %v290
        %431 = vmatpush.msra.mxu0 %v288
        %432 = vmatpush.msra.mxu0 %v286
        %433 = vmatpush.msra.mxu0 %v284
        %434 = vmatpush.msra.mxu0 %v282
        %435 = vmatpush.msra.mxu0 %v280
        %436 = vmatpush.msra.mxu0 %v278
        %437 = vmatpush.msra.mxu0 %v276
        %438 = vmatpush.msra.mxu0 %v274
        %439 = vmatmul.f32.gmra.mxu0 %v239
        %v440 = vpop.f32.mrf.mxu0
        %v441 = vadd.f32 %v421, %v440
        %442 = vdwg.mxu0
        %443 = vmatpush.msra.mxu0 %v336
        %444 = vmatpush.msra.mxu0 %v334
        %445 = vmatpush.msra.mxu0 %v332
        %446 = vmatpush.msra.mxu0 %v330
        %447 = vmatpush.msra.mxu0 %v328
        %448 = vmatpush.msra.mxu0 %v326
        %449 = vmatpush.msra.mxu0 %v324
        %450 = vmatpush.msra.mxu0 %v322
        %451 = vmatpush.msra.mxu0 %v320
        %452 = vmatpush.msra.mxu0 %v318
        %453 = vmatpush.msra.mxu0 %v316
        %454 = vmatpush.msra.mxu0 %v314
        %455 = vmatpush.msra.mxu0 %v312
        %456 = vmatpush.msra.mxu0 %v310
        %457 = vmatpush.msra.mxu0 %v308
        %458 = vmatpush.msra.mxu0 %v306
        %459 = vmatmul.f32.gmra.mxu0 %v240
        %v460 = vpop.f32.mrf.mxu0
        %v461 = vadd.f32 %v441, %v460
        %462 = vdwg.mxu0
        %v463 = vmul.f32 %v401, 0.1
        %v464 = vmul.f32 %v461, 0.1
        %v465 = vmax.f32 %v401, %v463
        %v466 = vmax.f32 %v461, %v464
        %467 = vst [vmem:[%s237] sm:$0xff] %v465
        %468 = vst [vmem:[%s237 + $0x8] sm:$0xff] %v466
        %s469 = sand.u32 %s113, 1
        %s470 = scalar_lea.sflag [#allocation4], %s469
        %s471 = sand.u32 %s113, 1
        %s472 = smul.addr %s471, 16
        %s473 = scalar_lea.vmem [#allocation8], %s472
        // Predicated region
        $region45: #{tpu_custom_call.1} parent=31 // pred_check
          %p474 = pneg %p123
        $region46: #{tpu_custom_call.1} parent=31 // pred_check_branch
          %476 = sbr.rel (%p474) target = $region48
        $region47: #{tpu_custom_call.1} parent=31 // pred_region
          %478 = vsyncadd %s470, 0
          %s479 = smul.addr %s26, 2
          %s480 = smul.addr %s25, 2
          %s481 = sadd.s32 %s479, %s480
          %s482 = smul.addr %s481, 8
          %s483 = scalar_lea.hbm %s3, %s482
          %s485 = sshll.u32 %s473, 4
          %s486 = int_to_ptr.vmem [resolvable:$true] %s485
          %s487 = sshll.u32 %s483, 4
          %s488 = int_to_ptr.hbm [resolvable:$true] %s487
          %490 = dma.vmem_to_hbm [thread:$0]  %s486, 256, %s488, %s470
        $region48: #{tpu_custom_call.1} parent=31 // pred_fallthru
          _
      $region32: #{tpu_custom_call.1} parent=5 // pred_fallthru
        _
      %p491 = scmp.le.s32.totalorder 2, %s16
      // Predicated region
      $region49: #{tpu_custom_call.1} parent=5 // pred_check
        %p492 = pneg %p491
      $region50: #{tpu_custom_call.1} parent=5 // pred_check_branch
        %494 = sbr.rel (%p492) target = $region52
      $region51: #{tpu_custom_call.1} parent=5 // pred_region
        %s495 = ssub.s32 %s16, 2
        // Predicated region
        $region53: #{tpu_custom_call.1} parent=51 // pred_check
          %p496 = pneg %p129
        $region54: #{tpu_custom_call.1} parent=51 // pred_check_branch
          %498 = sbr.rel (%p496) target = $region56
        $region55: #{tpu_custom_call.1} parent=51 // pred_region
          %s499 = sand.u32 %s114, 1
          %s500 = scalar_lea.sflag [#allocation4], %s499
          %s501 = sand.u32 %s114, 1
          %s502 = smul.addr %s501, 16
          %s503 = scalar_lea.vmem [#allocation8], %s502
          %505 = dma.done %s500, 256
        $region56: #{tpu_custom_call.1} parent=51 // pred_fallthru
          _
      $region52: #{tpu_custom_call.1} parent=5 // pred_fallthru
        _
    $region6: #{tpu_custom_call.1} parent=1 // loop_footer
      %s20 = sadd.s32 1, %s16
    $region7: #{tpu_custom_call.1} parent=1 // loop_footer_branch
      %15 = sbr.rel target = $region3
    $region8: #{tpu_custom_call.1} parent=1 // loop_exit
      _
    %506 = vsyncpa [#allocation3], 1
    %s507 = scalar_lea.sflag [#allocation3], 1
    %508 = vsyncpa %s507, 1
    %509 = vsyncpa [#allocation6], 1
    %510 = vsyncpa [#allocation4], 1
    %s511 = scalar_lea.sflag [#allocation4], 1
    %512 = vsyncpa %s511, 1

</llo_original>
